<compile_context>
chip_gen: v5e
topology: v5e:2x2
jax: 0.10.0
libtpu: 0.0.40
codegen_flags: <defaults>
</compile_context>

<pallas_src>
import jax
import jax.numpy as jnp
from jax.experimental import pallas as pl
from jax.experimental.pallas import tpu as pltpu


def _round_up(x, m):
    return (x + m - 1) // m * m


def _choose_batch_tiling(B, block_b=512):
    """Pick (padded_batch, batch_tile) with batch_tile a multiple of 8 that
    divides padded_batch exactly."""
    b8 = _round_up(B, 8)
    if b8 < 16:
        return b8, b8                       # one tiny tile, grid=(1,)
    # >= 2 tiles so both TensorCores get work on v7x; cap tile at ~block_b rows.
    n_tiles = max(2, pl.cdiv(b8, block_b))
    tb = _round_up(pl.cdiv(b8, n_tiles), 8)
    return n_tiles * tb, tb


def policy_mlp_kernel(x_ref, w1_ref, b1_ref, w2_ref, b2_ref, w3_ref, b3_ref, o_ref):
    x = x_ref[...]
    h1 = jnp.dot(x, w1_ref[...], preferred_element_type=jnp.float32) + b1_ref[...]
    h1 = jnp.maximum(h1, 0.0)                      # F.relu(self.fc1(state))
    h2 = jnp.dot(h1, w2_ref[...], preferred_element_type=jnp.float32) + b2_ref[...]
    h2 = jnp.maximum(h2, 0.0)                      # F.relu(self.fc2(x))
    out = jnp.dot(h2, w3_ref[...], preferred_element_type=jnp.float32) + b3_ref[...]
    o_ref[...] = out.astype(o_ref.dtype)           # self.fc3(x), no activation


def policy_network_forward(x, w1, b1, w2, b2, w3, b3, *, block_b=512):
    """x: (B, input_dim) f32. Returns logits (B, n_actions) f32."""
    B, d_in = x.shape
    h1_dim = w1.shape[1]
    h2_dim = w2.shape[1]
    n_actions = w3.shape[1]

    b_p, tb = _choose_batch_tiling(B, block_b)

    xp = x.astype(jnp.float32)
    if b_p != B:
        # Only the batch (sublane) axis is padded; padded rows are sliced off below.
        xp = jnp.zeros((b_p, d_in), jnp.float32).at[:B, :].set(xp)

    grid = (b_p // tb,)

    # Batch-tiled x / out; weights & biases resident in VMEM (constant index_map),
    # all at their true (unpadded) widths via full-extent last-dim blocks.
    in_specs = [
        pl.BlockSpec((tb, d_in), lambda i: (i, 0)),
        pl.BlockSpec((d_in, h1_dim), lambda i: (0, 0)),
        pl.BlockSpec((1, h1_dim), lambda i: (0, 0)),
        pl.BlockSpec((h1_dim, h2_dim), lambda i: (0, 0)),
        pl.BlockSpec((1, h2_dim), lambda i: (0, 0)),
        pl.BlockSpec((h2_dim, n_actions), lambda i: (0, 0)),
        pl.BlockSpec((1, n_actions), lambda i: (0, 0)),
    ]
    out_specs = pl.BlockSpec((tb, n_actions), lambda i: (i, 0))

    # Real (unpadded) work, so XLA's scheduler isn't misled.
    flops = 2 * B * (d_in * h1_dim + h1_dim * h2_dim + h2_dim * n_actions)
    bytes_accessed = 4 * (
        B * d_in
        + d_in * h1_dim + h1_dim
        + h1_dim * h2_dim + h2_dim
        + h2_dim * n_actions + n_actions
        + B * n_actions
    )

    out = pl.pallas_call(
        policy_mlp_kernel,
        out_shape=jax.ShapeDtypeStruct((b_p, n_actions), jnp.float32),
        grid=grid,
        in_specs=in_specs,
        out_specs=out_specs,
        compiler_params=pltpu.CompilerParams(
            dimension_semantics=("parallel",),
        ),
        cost_estimate=pl.CostEstimate(
            flops=flops, transcendentals=0, bytes_accessed=bytes_accessed
        ),
    )(xp, w1, b1, w2, b2, w3, b3)

    if b_p != B:
        out = out[:B]
    return out


def init_linear(key, in_dim, out_dim):
    """Deterministic init mimicking nn.Linear's U(-1/sqrt(in), 1/sqrt(in))."""
    kw, kb = jax.random.split(key)
    bound = 1.0 / jnp.sqrt(jnp.float32(in_dim))
    w = jax.random.uniform(kw, (in_dim, out_dim), jnp.float32, -bound, bound)
    b = jax.random.uniform(kb, (1, out_dim), jnp.float32, -bound, bound)
    return w, b


if __name__ == "__main__":
    # Small shapes consistent with the module: input_dims=(8,), fc1=32, fc2=32, n_actions=4
    batch, input_dim, fc1_dims, fc2_dims, n_actions = 2, 8, 32, 32, 4

    key = jax.random.PRNGKey(0)
    k_x, k1, k2, k3 = jax.random.split(key, 4)

    x = jax.random.normal(k_x, (batch, input_dim), jnp.float32)
    w1, b1 = init_linear(k1, input_dim, fc1_dims)
    w2, b2 = init_linear(k2, fc1_dims, fc2_dims)
    w3, b3 = init_linear(k3, fc2_dims, n_actions)

    fwd = jax.jit(policy_network_forward)
    out = jax.block_until_ready(fwd(x, w1, b1, w2, b2, w3, b3))

    # Reference check in plain JAX (same math as the PyTorch forward).
    ref = jnp.maximum(x @ w1 + b1, 0.0)
    ref = jnp.maximum(ref @ w2 + b2, 0.0)
    ref = ref @ w3 + b3
    assert out.shape == (batch, n_actions)
    assert jnp.allclose(out, ref, atol=1e-5, rtol=1e-5)

    # Also sanity-check a larger batch that exercises the two-tile grid path.
    xb = jax.random.normal(k_x, (513, input_dim), jnp.float32)
    outb = jax.block_until_ready(fwd(xb, w1, b1, w2, b2, w3, b3))
    refb = jnp.maximum(xb @ w1 + b1, 0.0)
    refb = jnp.maximum(refb @ w2 + b2, 0.0)
    refb = refb @ w3 + b3
    assert outb.shape == (513, n_actions)
    assert jnp.allclose(outb, refb, atol=1e-5, rtol=1e-5)

    print("KERNEL_OK")
</pallas_src>

<mosaic_0001>
module attributes {stable_mosaic.version = 11 : i64} {
  func.func @policy_mlp_kernel(%arg0: i32, %arg1: memref<8x8xf32, #tpu.memory_space<vmem>>, %arg2: memref<8x32xf32, #tpu.memory_space<vmem>>, %arg3: memref<1x32xf32, #tpu.memory_space<vmem>>, %arg4: memref<32x32xf32, #tpu.memory_space<vmem>>, %arg5: memref<1x32xf32, #tpu.memory_space<vmem>>, %arg6: memref<32x4xf32, #tpu.memory_space<vmem>>, %arg7: memref<1x4xf32, #tpu.memory_space<vmem>>, %arg8: memref<8x4xf32, #tpu.memory_space<vmem>>) attributes {dimension_semantics = [#tpu.dimension_semantics<parallel>], iteration_bounds = array<i64: 1>, scalar_prefetch = 0 : i64, scratch_operands = 0 : i64, tpu.core_type = #tpu.core_type<tc>, window_params = [{transform_indices = @transform_0, window_bounds = array<i64: 8, 8>}, {pipeline_mode = #tpu.pipeline_mode<synchronous>, transform_indices = @transform_1, window_bounds = array<i64: 8, 32>}, {pipeline_mode = #tpu.pipeline_mode<synchronous>, transform_indices = @transform_2, window_bounds = array<i64: 1, 32>}, {pipeline_mode = #tpu.pipeline_mode<synchronous>, transform_indices = @transform_3, window_bounds = array<i64: 32, 32>}, {pipeline_mode = #tpu.pipeline_mode<synchronous>, transform_indices = @transform_4, window_bounds = array<i64: 1, 32>}, {pipeline_mode = #tpu.pipeline_mode<synchronous>, transform_indices = @transform_5, window_bounds = array<i64: 32, 4>}, {pipeline_mode = #tpu.pipeline_mode<synchronous>, transform_indices = @transform_6, window_bounds = array<i64: 1, 4>}, {transform_indices = @transform_7, window_bounds = array<i64: 8, 4>}]} {
    %c0 = arith.constant 0 : index
    %c0_0 = arith.constant 0 : index
    %0 = vector.load %arg1[%c0, %c0_0] : memref<8x8xf32, #tpu.memory_space<vmem>>, vector<8x8xf32>
    %c0_1 = arith.constant 0 : index
    %c0_2 = arith.constant 0 : index
    %1 = vector.load %arg2[%c0_1, %c0_2] : memref<8x32xf32, #tpu.memory_space<vmem>>, vector<8x32xf32>
    %cst = arith.constant dense<0.000000e+00> : vector<8x32xf32>
    %2 = tpu.matmul %0, %1, %cst {dimension_numbers = #tpu.dot_dimension_numbers<[1], [0], [0], [1], [0, 0, 1, 1], [], []>} : vector<8x8xf32>, vector<8x32xf32>, vector<8x32xf32> -> vector<8x32xf32>
    %c0_3 = arith.constant 0 : index
    %c0_4 = arith.constant 0 : index
    %3 = vector.load %arg3[%c0_3, %c0_4] : memref<1x32xf32, #tpu.memory_space<vmem>>, vector<1x32xf32>
    %4 = vector.broadcast %3 : vector<1x32xf32> to vector<8x32xf32>
    %5 = arith.addf %2, %4 : vector<8x32xf32>
    %cst_5 = arith.constant 0.000000e+00 : f32
    %6 = vector.broadcast %cst_5 : f32 to vector<8x32xf32>
    %7 = arith.maximumf %5, %6 : vector<8x32xf32>
    %c0_6 = arith.constant 0 : index
    %c0_7 = arith.constant 0 : index
    %8 = vector.load %arg4[%c0_6, %c0_7] : memref<32x32xf32, #tpu.memory_space<vmem>>, vector<32x32xf32>
    %cst_8 = arith.constant dense<0.000000e+00> : vector<8x32xf32>
    %9 = tpu.matmul %7, %8, %cst_8 {dimension_numbers = #tpu.dot_dimension_numbers<[1], [0], [0], [1], [0, 0, 1, 1], [], []>} : vector<8x32xf32>, vector<32x32xf32>, vector<8x32xf32> -> vector<8x32xf32>
    %c0_9 = arith.constant 0 : index
    %c0_10 = arith.constant 0 : index
    %10 = vector.load %arg5[%c0_9, %c0_10] : memref<1x32xf32, #tpu.memory_space<vmem>>, vector<1x32xf32>
    %11 = vector.broadcast %10 : vector<1x32xf32> to vector<8x32xf32>
    %12 = arith.addf %9, %11 : vector<8x32xf32>
    %cst_11 = arith.constant 0.000000e+00 : f32
    %13 = vector.broadcast %cst_11 : f32 to vector<8x32xf32>
    %14 = arith.maximumf %12, %13 : vector<8x32xf32>
    %c0_12 = arith.constant 0 : index
    %c0_13 = arith.constant 0 : index
    %15 = vector.load %arg6[%c0_12, %c0_13] : memref<32x4xf32, #tpu.memory_space<vmem>>, vector<32x4xf32>
    %cst_14 = arith.constant dense<0.000000e+00> : vector<8x4xf32>
    %16 = tpu.matmul %14, %15, %cst_14 {dimension_numbers = #tpu.dot_dimension_numbers<[1], [0], [0], [1], [0, 0, 1, 1], [], []>} : vector<8x32xf32>, vector<32x4xf32>, vector<8x4xf32> -> vector<8x4xf32>
    %c0_15 = arith.constant 0 : index
    %c0_16 = arith.constant 0 : index
    %17 = vector.load %arg7[%c0_15, %c0_16] : memref<1x4xf32, #tpu.memory_space<vmem>>, vector<1x4xf32>
    %18 = vector.broadcast %17 : vector<1x4xf32> to vector<8x4xf32>
    %19 = arith.addf %16, %18 : vector<8x4xf32>
    %c0_17 = arith.constant 0 : index
    %c0_18 = arith.constant 0 : index
    %20 = vector.load %arg8[%c0_17, %c0_18] : memref<8x4xf32, #tpu.memory_space<vmem>>, vector<8x4xf32>
    tpu.vector_store %arg8[%c0_17, %c0_18], %19 {strides = array<i32>} : memref<8x4xf32, #tpu.memory_space<vmem>>, vector<8x4xf32>,
    return
  }
  func.func @transform_0(%arg0: i32) -> (i32, i32) {
    %c0_i32 = arith.constant 0 : i32
    %c0_i32_0 = arith.constant 0 : i32
    return %arg0, %c0_i32 : i32, i32
  }
  func.func @transform_1(%arg0: i32) -> (i32, i32) {
    %c0_i32 = arith.constant 0 : i32
    %c0_i32_0 = arith.constant 0 : i32
    %c0_i32_1 = arith.constant 0 : i32
    return %c0_i32, %c0_i32_0 : i32, i32
  }
  func.func @transform_2(%arg0: i32) -> (i32, i32) {
    %c0_i32 = arith.constant 0 : i32
    %c0_i32_0 = arith.constant 0 : i32
    %c0_i32_1 = arith.constant 0 : i32
    return %c0_i32, %c0_i32_0 : i32, i32
  }
  func.func @transform_3(%arg0: i32) -> (i32, i32) {
    %c0_i32 = arith.constant 0 : i32
    %c0_i32_0 = arith.constant 0 : i32
    %c0_i32_1 = arith.constant 0 : i32
    return %c0_i32, %c0_i32_0 : i32, i32
  }
  func.func @transform_4(%arg0: i32) -> (i32, i32) {
    %c0_i32 = arith.constant 0 : i32
    %c0_i32_0 = arith.constant 0 : i32
    %c0_i32_1 = arith.constant 0 : i32
    return %c0_i32, %c0_i32_0 : i32, i32
  }
  func.func @transform_5(%arg0: i32) -> (i32, i32) {
    %c0_i32 = arith.constant 0 : i32
    %c0_i32_0 = arith.constant 0 : i32
    %c0_i32_1 = arith.constant 0 : i32
    return %c0_i32, %c0_i32_0 : i32, i32
  }
  func.func @transform_6(%arg0: i32) -> (i32, i32) {
    %c0_i32 = arith.constant 0 : i32
    %c0_i32_0 = arith.constant 0 : i32
    %c0_i32_1 = arith.constant 0 : i32
    return %c0_i32, %c0_i32_0 : i32, i32
  }
  func.func @transform_7(%arg0: i32) -> (i32, i32) {
    %c0_i32 = arith.constant 0 : i32
    %c0_i32_0 = arith.constant 0 : i32
    return %arg0, %c0_i32 : i32, i32
  }
}

</mosaic_0001>

<llo_original>
// kernel: policy_network_forward.1
$region0: #{policy_network_forward.1}
  #allocation0 [shape = 'u32[]', space=smem, size = 0x4, offset = 0x4, fixed_abs, tag = 'smem constant byte address 0x4 - core index']
  #allocation1 [shape = 'u32[72,128]{1,0:T(1,128)}', space=vmem, size = 0x9000, scoped, tag = 'internal scratch']
  %s0 = inlined_call_operand.vmem [shape: f32[8,8], index: 0, kind: input, shape index: {}]
  %s1 = inlined_call_operand.vmem [shape: f32[8,32], index: 1, kind: input, shape index: {}]
  %s2 = inlined_call_operand.vmem [shape: f32[1,32], index: 2, kind: input, shape index: {}]
  %s3 = inlined_call_operand.vmem [shape: f32[32,32], index: 3, kind: input, shape index: {}]
  %s4 = inlined_call_operand.vmem [shape: f32[1,32], index: 4, kind: input, shape index: {}]
  %s5 = inlined_call_operand.vmem [shape: f32[32,4], index: 5, kind: input, shape index: {}]
  %s6 = inlined_call_operand.vmem [shape: f32[1,4], index: 6, kind: input, shape index: {}]
  %s7 = inlined_call_operand.vmem [shape: f32[8,4], index: 7, kind: output, shape index: {}]
  %s8 = sld [smem:[#allocation0]]
  $region38: #{policy_network_forward.1} parent=0
    _
  %s10 = ssub.s32 1, %s8
  %s11 = scalar_select 0, %s10, %s8
  // Predicated region
  $region2: #{policy_network_forward.1} parent=0 // pred_check
    _
  $region3: #{policy_network_forward.1} parent=0 // pred_check_branch
    %13 = sbr.rel (0) target = $region5
  $region4: #{policy_network_forward.1} parent=0 // pred_region
    _
  $region5: #{policy_network_forward.1} parent=0 // pred_fallthru
    _
  // Predicated region
  $region6: #{policy_network_forward.1} parent=0 // pred_check
    _
  $region7: #{policy_network_forward.1} parent=0 // pred_check_branch
    %15 = sbr.rel (0) target = $region9
  $region8: #{policy_network_forward.1} parent=0 // pred_region
    _
  $region9: #{policy_network_forward.1} parent=0 // pred_fallthru
    _
  // Predicated region
  $region10: #{policy_network_forward.1} parent=0 // pred_check
    _
  $region11: #{policy_network_forward.1} parent=0 // pred_check_branch
    %17 = sbr.rel (0) target = $region13
  $region12: #{policy_network_forward.1} parent=0 // pred_region
    _
  $region13: #{policy_network_forward.1} parent=0 // pred_fallthru
    _
  // Predicated region
  $region14: #{policy_network_forward.1} parent=0 // pred_check
    _
  $region15: #{policy_network_forward.1} parent=0 // pred_check_branch
    %19 = sbr.rel (0) target = $region17
  $region16: #{policy_network_forward.1} parent=0 // pred_region
    _
  $region17: #{policy_network_forward.1} parent=0 // pred_fallthru
    _
  // Predicated region
  $region18: #{policy_network_forward.1} parent=0 // pred_check
    _
  $region19: #{policy_network_forward.1} parent=0 // pred_check_branch
    %21 = sbr.rel (0) target = $region21
  $region20: #{policy_network_forward.1} parent=0 // pred_region
    _
  $region21: #{policy_network_forward.1} parent=0 // pred_fallthru
    _
  // Predicated region
  $region22: #{policy_network_forward.1} parent=0 // pred_check
    _
  $region23: #{policy_network_forward.1} parent=0 // pred_check_branch
    %23 = sbr.rel (0) target = $region25
  $region24: #{policy_network_forward.1} parent=0 // pred_region
    _
  $region25: #{policy_network_forward.1} parent=0 // pred_fallthru
    _
  // Predicated region
  $region26: #{policy_network_forward.1} parent=0 // pred_check
    _
  $region27: #{policy_network_forward.1} parent=0 // pred_check_branch
    %25 = sbr.rel (0) target = $region29
  $region28: #{policy_network_forward.1} parent=0 // pred_region
    _
  $region29: #{policy_network_forward.1} parent=0 // pred_fallthru
    _
  %v26 = vld [vmem:[%s0] sm:$0xff]
  %v27 = vld [vmem:[%s1] sm:$0xff]
  %v28 = vld [vmem:[%s2] sm:$0x1]
  %v30 = vperm.slane %v28, 0
  %vm32 = vcmask 64512
  %v34 = vsel %vm32, %v26, 0
  %36 = vmatpush.msra.mxu0 0.0
  %37 = vmatpush.msra.mxu0 0.0
  %38 = vmatpush.msra.mxu0 0.0
  %39 = vmatpush.msra.mxu0 0.0
  %40 = vmatpush.msra.mxu0 0.0
  %41 = vmatpush.msra.mxu0 0.0
  %42 = vmatpush.msra.mxu0 0.0
  %43 = vmatpush.msra.mxu0 0.0
  %44 = vmatpush.msra.mxu0 0.0
  %45 = vmatpush.msra.mxu0 0.0
  %46 = vmatpush.msra.mxu0 0.0
  %47 = vmatpush.msra.mxu0 0.0
  %48 = vmatpush.msra.mxu0 0.0
  %49 = vmatpush.msra.mxu0 0.0
  %50 = vmatpush.msra.mxu0 0.0
  %51 = vmatpush.msra.mxu0 %v27
  %52 = vmatmul.f32.gmra.mxu0 %v34
  %v53 = vpop.f32.mrf.mxu0
  %v54 = vadd.f32 %v30, %v53
  %55 = vdwg.mxu0
  %v56 = vmax.f32 %v54, 0.0
  %v57 = vld [vmem:[%s3] sm:$0xff]
  %v58 = vld [vmem:[%s3 + $0x8] sm:$0xff]
  %v59 = vld [vmem:[%s3 + $0x10] sm:$0xff]
  %v60 = vld [vmem:[%s3 + $0x18] sm:$0xff]
  %v61 = vld [vmem:[%s4] sm:$0x1]
  %v63 = vperm.slane %v61, 0
  %vm65 = vcmask 261120
  %v67 = vsel %vm65, %v56, 0
  %69 = vmatpush.msra.mxu0 0.0
  %70 = vmatpush.msra.mxu0 0.0
  %71 = vmatpush.msra.mxu0 0.0
  %72 = vmatpush.msra.mxu0 0.0
  %73 = vmatpush.msra.mxu0 0.0
  %74 = vmatpush.msra.mxu0 0.0
  %75 = vmatpush.msra.mxu0 0.0
  %76 = vmatpush.msra.mxu0 0.0
  %77 = vmatpush.msra.mxu0 0.0
  %78 = vmatpush.msra.mxu0 0.0
  %79 = vmatpush.msra.mxu0 0.0
  %80 = vmatpush.msra.mxu0 0.0
  %81 = vmatpush.msra.mxu0 %v60
  %82 = vmatpush.msra.mxu0 %v59
  %83 = vmatpush.msra.mxu0 %v58
  %84 = vmatpush.msra.mxu0 %v57
  %85 = vmatmul.f32.gmra.mxu0 %v67
  %v86 = vpop.f32.mrf.mxu0
  %v87 = vadd.f32 %v63, %v86
  %88 = vdwg.mxu0
  %v89 = vmax.f32 %v87, 0.0
  %v90 = vld [vmem:[%s5] sm:$0xff]
  %v91 = vld [vmem:[%s5 + $0x8] sm:$0xff]
  %v92 = vld [vmem:[%s5 + $0x10] sm:$0xff]
  %v93 = vld [vmem:[%s5 + $0x18] sm:$0xff]
  %v94 = vld [vmem:[%s6] sm:$0x1]
  %v96 = vperm.slane %v94, 0
  %v99 = vsel %vm65, %v89, 0
  %101 = vmatpush.msra.mxu0 0.0
  %102 = vmatpush.msra.mxu0 0.0
  %103 = vmatpush.msra.mxu0 0.0
  %104 = vmatpush.msra.mxu0 0.0
  %105 = vmatpush.msra.mxu0 0.0
  %106 = vmatpush.msra.mxu0 0.0
  %107 = vmatpush.msra.mxu0 0.0
  %108 = vmatpush.msra.mxu0 0.0
  %109 = vmatpush.msra.mxu0 0.0
  %110 = vmatpush.msra.mxu0 0.0
  %111 = vmatpush.msra.mxu0 0.0
  %112 = vmatpush.msra.mxu0 0.0
  %113 = vmatpush.msra.mxu0 %v93
  %114 = vmatpush.msra.mxu0 %v92
  %115 = vmatpush.msra.mxu0 %v91
  %116 = vmatpush.msra.mxu0 %v90
  %117 = vmatmul.f32.gmra.mxu0 %v99
  %v118 = vpop.f32.mrf.mxu0
  %v119 = vadd.f32 %v96, %v118
  %120 = vdwg.mxu0
  %vm121 = vcmask 31744
  %122 = vst.msk [vmem:[%s7] sm:$0xff] %vm121, %v119
  // Predicated region
  $region30: #{policy_network_forward.1} parent=0 // pred_check
    _
  $region31: #{policy_network_forward.1} parent=0 // pred_check_branch
    %124 = sbr.rel (0) target = $region33
  $region32: #{policy_network_forward.1} parent=0 // pred_region
    _
  $region33: #{policy_network_forward.1} parent=0 // pred_fallthru
    _
  // Predicated region
  $region34: #{policy_network_forward.1} parent=0 // pred_check
    _
  $region35: #{policy_network_forward.1} parent=0 // pred_check_branch
    %126 = sbr.rel (0) target = $region37
  $region36: #{policy_network_forward.1} parent=0 // pred_region
    _
  $region37: #{policy_network_forward.1} parent=0 // pred_fallthru
    _

</llo_original>
